<compile_context>
chip_gen: v7x
topology: tpu7x:2x2x1
jax: 0.10.0
libtpu: 0.0.40
codegen_flags: <defaults>
</compile_context>

<pallas_src>
import functools

import jax
import jax.numpy as jnp
from jax import lax
from jax.experimental import pallas as pl
from jax.experimental.pallas import tpu as pltpu


def _round_up(x, m):
    return ((x + m - 1) // m) * m


def _vmem_capacity_bytes():
    """Per-TensorCore VMEM capacity (128 MiB v5e/v6e, 64 MiB v7x); conservative fallback."""
    try:
        return int(pltpu.get_tpu_info().vmem_capacity_bytes)
    except Exception:  # pragma: no cover - defensive; assume smallest (v7x) capacity
        return 64 << 20


# ------------------------ fused single-pass (small/medium z) ------------------------ #

def _fused_kernel(z2_ref, w1t_ref, b1_ref, w2_ref, out_ref, *, n_total, n_views, in_size):
    """beta + weighted combine in one pass; z2 is held VMEM-resident (read from HBM once)."""
    z2 = z2_ref[...]                                    # (N, M*D) f32
    w1t = w1t_ref[...]                                  # (D, Hp) bf16 (pre-cast in wrapper)
    b1 = b1_ref[...]                                    # (1, Hp) f32

    sums = []
    for m in range(n_views):                            # M is small -> unrolled
        zm = z2[:, m * in_size:(m + 1) * in_size].astype(jnp.bfloat16)      # (N, D)
        hm = jnp.tanh(jnp.dot(zm, w1t, preferred_element_type=jnp.float32) + b1)
        sums.append(jnp.sum(hm, axis=0, keepdims=True))                     # (1, Hp)
    hsum = jnp.concatenate(sums, axis=0)                # (M, Hp)

    # mean over N + hoisted Linear2 (VPU lane-reduce), exact softmax (runs once).
    w = jnp.sum(hsum * w2_ref[...], axis=1, keepdims=True) * (1.0 / n_total)   # (M, 1)
    w = w - jnp.max(w, axis=0, keepdims=True)
    e = jnp.exp(w)
    beta = e / jnp.sum(e, axis=0, keepdims=True)        # (M, 1) f32, exact reciprocal

    acc = z2[:, 0:in_size] * beta[0:1, 0:1]
    for m in range(1, n_views):
        acc = acc + z2[:, m * in_size:(m + 1) * in_size] * beta[m:m + 1, 0:1]
    out_ref[...] = acc.astype(out_ref.dtype)


# ------------------------------ phase 1: partial scores ----------------------------- #

def _scores_partial_kernel(z2_ref, w1t_ref, b1_ref, part_ref,
                           *, n_total, n_views, in_size, mask_rows):
    """Per-chunk partial sums of tanh(z @ W1^T + b1); no serial accumulator -> megacore OK."""
    tile_n = z2_ref.shape[0]
    z2 = z2_ref[...]                                    # (TILE_N, M*D) f32
    w1t = w1t_ref[...]                                  # (D, Hp) bf16
    b1 = b1_ref[...]                                    # (1, Hp) f32

    if mask_rows:                                       # only emitted when N % tile_n != 0
        i = pl.program_id(0)
        node_id = i * tile_n + lax.broadcasted_iota(jnp.int32, (tile_n, 1), 0)
        valid = node_id < n_total                       # (TILE_N, 1)

    partial = []
    for m in range(n_views):                            # M is small -> unrolled
        zm = z2[:, m * in_size:(m + 1) * in_size].astype(jnp.bfloat16)      # (TILE_N, D)
        hm = jnp.tanh(jnp.dot(zm, w1t, preferred_element_type=jnp.float32) + b1)
        if mask_rows:
            hm = jnp.where(valid, hm, 0.0)
        partial.append(jnp.sum(hm, axis=0, keepdims=True))                  # (1, Hp)
    part_ref[...] = jnp.concatenate(partial, axis=0)[None]                  # (1, M, Hp)


# --------------------------------- phase 2: combine --------------------------------- #

def _combine_kernel(beta_ref, z2_ref, out_ref, *, n_views, in_size):
    """out[n, :] = sum_m beta[m] * z[n, m, :]  (beta scalars read from SMEM)."""
    z2 = z2_ref[...]                                    # (TILE_N, M*D) f32
    acc = z2[:, 0:in_size] * beta_ref[0, 0]
    for m in range(1, n_views):
        acc = acc + z2[:, m * in_size:(m + 1) * in_size] * beta_ref[m, 0]
    out_ref[...] = acc.astype(out_ref.dtype)


# ------------------------------------- wrapper -------------------------------------- #

def hybrid_attention(z, w1, b1, w2, *, tile_nodes=None, fused=None):
    """z: (N, M, D) f32; w1: (H, D); b1: (H,); w2: (1, H).  Returns (N, D) f32.

    tile_nodes: optional override of the streamed tile height (rounded to a multiple of 8).
    fused: False disables the single-pass fast path; None/True = auto when it fits in VMEM.
    """
    N, M, D = z.shape
    H = w1.shape[0]
    Hp = _round_up(H, 128)   # lane-dense hidden dim (zero padding is exact)

    # Pre-padded / pre-cast weights.  W1^T is stored bf16 (half the resident footprint,
    # no per-grid-step VPU convert); b1 / W2 stay f32.
    w1_f = jnp.asarray(w1, jnp.float32)
    w1t_p = jnp.zeros((D, Hp), jnp.bfloat16).at[:, :H].set(w1_f.T.astype(jnp.bfloat16))
    b1_p = jnp.zeros((1, Hp), jnp.float32).at[:, :H].set(jnp.asarray(b1, jnp.float32).reshape(1, H))
    w2_p = jnp.zeros((1, Hp), jnp.float32).at[:, :H].set(jnp.asarray(w2, jnp.float32).reshape(1, H))

    # Single 2-D view shared by all kernels: views flattened onto the lane axis (free reshape
    # of the contiguous (N, M, D) array -> dense 128-wide HBM reads, dense VMEM tiles).
    z2 = jnp.asarray(z, jnp.float32).reshape(N, M * D)

    vmem_cap = _vmem_capacity_bytes()
    z_bytes = N * M * D * 4
    weight_bytes = D * Hp * 2 + 2 * Hp * 4              # bf16 W1^T + f32 b1 + f32 W2

    # ---- fused single-pass fast path: read z exactly once ----
    fused_need = z_bytes + N * Hp * 4 + N * D * 4 + weight_bytes
    fused_limit = min(4 << 20, vmem_cap // 8)
    if fused is not False and fused_need <= fused_limit:
        kern = functools.partial(_fused_kernel, n_total=N, n_views=M, in_size=D)
        return pl.pallas_call(
            kern,
            out_shape=jax.ShapeDtypeStruct((N, D), jnp.float32),
            grid=(1,),
            in_specs=[
                pl.BlockSpec((N, M * D), lambda i: (0, 0)),
                pl.BlockSpec((D, Hp), lambda i: (0, 0)),
                pl.BlockSpec((1, Hp), lambda i: (0, 0)),
                pl.BlockSpec((1, Hp), lambda i: (0, 0)),
            ],
            out_specs=pl.BlockSpec((N, D), lambda i: (0, 0)),
            compiler_params=pltpu.CompilerParams(
                dimension_semantics=("arbitrary",),
                vmem_limit_bytes=int(min(0.8 * vmem_cap, max(32 << 20, 4 * fused_need)))),
            cost_estimate=pl.CostEstimate(
                flops=2 * N * M * D * Hp + 2 * N * M * D,
                transcendentals=N * M * Hp,
                bytes_accessed=z_bytes + N * D * 4 + weight_bytes),
        )(z2, w1t_p, b1_p, w2_p)

    # ---- generation-aware tile sizing (multi-MiB streamed tiles, VMEM-budgeted) ----
    row_bytes = M * D * 4
    out_row_bytes = D * 4
    budget = min(int(vmem_cap * 0.45), 48 << 20)        # live-buffer cap (v7x has 64 MiB/TC)
    tn_budget = max(8, (budget - weight_bytes) // (2 * (row_bytes + out_row_bytes)))
    tn_target = max(8, (4 << 20) // row_bytes)          # ~4 MiB per z-tile buffer
    tn = tile_nodes if tile_nodes is not None else min(tn_target, 8192)
    tn = min(tn, tn_budget, _round_up(N, 8))
    tn = max(8, (tn // 8) * 8)
    grid_n = (N + tn - 1) // tn
    grid = (grid_n,)

    live_bytes = (2 * tn * row_bytes                    # double-buffered z tile
                  + 2 * tn * out_row_bytes              # double-buffered out tile (phase 2)
                  + weight_bytes                        # VMEM-resident weights
                  + 2 * M * Hp * 4)                     # phase-1 partial output block
    vmem_limit = int(min(0.8 * vmem_cap, max(32 << 20, live_bytes + (8 << 20))))

    # ---- phase 1: per-chunk partial hidden sums over a "parallel" grid ----
    scores = functools.partial(_scores_partial_kernel, n_total=N, n_views=M, in_size=D,
                               mask_rows=(N % tn != 0))
    partials = pl.pallas_call(
        scores,
        out_shape=jax.ShapeDtypeStruct((grid_n, M, Hp), jnp.float32),
        grid=grid,
        in_specs=[
            pl.BlockSpec((tn, M * D), lambda i: (i, 0)),          # z tile (streamed)
            pl.BlockSpec((D, Hp), lambda i: (0, 0)),              # W1^T bf16 (VMEM-resident)
            pl.BlockSpec((1, Hp), lambda i: (0, 0)),              # b1      (VMEM-resident)
        ],
        out_specs=pl.BlockSpec((1, M, Hp), lambda i: (i, 0, 0)),
        compiler_params=pltpu.CompilerParams(
            dimension_semantics=("parallel",), vmem_limit_bytes=vmem_limit),
        cost_estimate=pl.CostEstimate(
            flops=2 * N * M * D * Hp,
            transcendentals=N * M * Hp,
            bytes_accessed=z_bytes + weight_bytes + grid_n * M * Hp * 4),
    )(z2, w1t_p, b1_p)

    # Tiny (M, Hp) finalize in plain JAX: mean over N, hoisted Linear2, exact softmax.
    hsum = jnp.sum(partials, axis=0)                               # (M, Hp)
    w = jnp.sum(hsum * w2_p, axis=1, keepdims=True) * (1.0 / N)    # (M, 1)
    w = w - jnp.max(w, axis=0, keepdims=True)
    e = jnp.exp(w)
    beta = e / jnp.sum(e, axis=0, keepdims=True)                   # (M, 1) f32

    # ---- phase 2: weighted combine over views ----
    combine = functools.partial(_combine_kernel, n_views=M, in_size=D)
    out = pl.pallas_call(
        combine,
        out_shape=jax.ShapeDtypeStruct((N, D), jnp.float32),
        grid=grid,
        in_specs=[
            pl.BlockSpec(memory_space=pltpu.MemorySpace.SMEM),    # beta scalars
            pl.BlockSpec((tn, M * D), lambda i: (i, 0)),          # z tile (streamed)
        ],
        out_specs=pl.BlockSpec((tn, D), lambda i: (i, 0)),
        compiler_params=pltpu.CompilerParams(
            dimension_semantics=("parallel",), vmem_limit_bytes=vmem_limit),
        cost_estimate=pl.CostEstimate(
            flops=2 * N * M * D, transcendentals=0,
            bytes_accessed=z_bytes + N * D * 4 + M * 4),
    )(beta, z2)
    return out


def hybrid_attention_ref(z, w1, b1, w2):
    """Pure-JAX (f32) reference mirroring the PyTorch forward."""
    proj = jnp.tanh(jnp.einsum("nmd,hd->nmh", z, w1) + b1)     # (N, M, H)
    s = jnp.einsum("nmh,oh->nmo", proj, w2)                    # (N, M, 1)
    w = jnp.mean(s, axis=0)                                    # (M, 1)
    beta = jax.nn.softmax(w, axis=0)                           # (M, 1)
    return jnp.sum(beta[None, :, :] * z, axis=1)               # (N, D)


if __name__ == "__main__":
    key = jax.random.PRNGKey(0)
    k_z, k_w1, k_b1, k_w2, k_z2 = jax.random.split(key, 5)

    M, D, H = 4, 32, 32                # metapaths, in_size, hidden_size
    w1 = jax.random.normal(k_w1, (H, D), dtype=jnp.float32) * 0.1   # Linear(D->H).weight
    b1 = jax.random.normal(k_b1, (H,), dtype=jnp.float32) * 0.1     # Linear(D->H).bias
    w2 = jax.random.normal(k_w2, (1, H), dtype=jnp.float32) * 0.1   # Linear(H->1).weight

    # Case 1: tiny N -> fused single-pass path (z read once).
    N1 = 8
    z_a = jax.random.normal(k_z, (N1, M, D), dtype=jnp.float32)
    out_a = jax.block_until_ready(jax.jit(hybrid_attention)(z_a, w1, b1, w2))
    ref_a = hybrid_attention_ref(z_a, w1, b1, w2)
    assert out_a.shape == (N1, D)
    # bf16 MXU operands (f32 accumulation) in the score path -> slightly looser tolerance.
    assert jnp.allclose(out_a, ref_a, atol=2e-2, rtol=2e-2), "fused-path mismatch vs reference"

    # Case 2: streaming two-phase path with a ragged last tile (N % tile_nodes != 0).
    N2 = 300
    z_b = jax.random.normal(k_z2, (N2, M, D), dtype=jnp.float32)
    stream_fn = jax.jit(functools.partial(hybrid_attention, tile_nodes=128, fused=False))
    out_b = jax.block_until_ready(stream_fn(z_b, w1, b1, w2))
    ref_b = hybrid_attention_ref(z_b, w1, b1, w2)
    assert out_b.shape == (N2, D)
    assert jnp.allclose(out_b, ref_b, atol=2e-2, rtol=2e-2), "streaming-path mismatch vs reference"

    print("KERNEL_OK")
</pallas_src>

<mosaic_0001>
module attributes {stable_mosaic.version = 11 : i64} {
  func.func @_fused_kernel(%arg0: i32, %arg1: memref<8x128xf32, #tpu.memory_space<vmem>>, %arg2: memref<32x128xbf16, #tpu.memory_space<vmem>>, %arg3: memref<1x128xf32, #tpu.memory_space<vmem>>, %arg4: memref<1x128xf32, #tpu.memory_space<vmem>>, %arg5: memref<8x32xf32, #tpu.memory_space<vmem>>) attributes {dimension_semantics = [#tpu.dimension_semantics<arbitrary>], iteration_bounds = array<i64: 1>, scalar_prefetch = 0 : i64, scratch_operands = 0 : i64, tpu.core_type = #tpu.core_type<tc>, window_params = [{pipeline_mode = #tpu.pipeline_mode<synchronous>, transform_indices = @transform_0, window_bounds = array<i64: 8, 128>}, {pipeline_mode = #tpu.pipeline_mode<synchronous>, transform_indices = @transform_1, window_bounds = array<i64: 32, 128>}, {pipeline_mode = #tpu.pipeline_mode<synchronous>, transform_indices = @transform_2, window_bounds = array<i64: 1, 128>}, {pipeline_mode = #tpu.pipeline_mode<synchronous>, transform_indices = @transform_3, window_bounds = array<i64: 1, 128>}, {pipeline_mode = #tpu.pipeline_mode<synchronous>, transform_indices = @transform_4, window_bounds = array<i64: 8, 32>}]} {
    %c0 = arith.constant 0 : index
    %c0_0 = arith.constant 0 : index
    %0 = vector.load %arg1[%c0, %c0_0] : memref<8x128xf32, #tpu.memory_space<vmem>>, vector<8x128xf32>
    %c0_1 = arith.constant 0 : index
    %c0_2 = arith.constant 0 : index
    %1 = vector.load %arg2[%c0_1, %c0_2] : memref<32x128xbf16, #tpu.memory_space<vmem>>, vector<32x128xbf16>
    %c0_3 = arith.constant 0 : index
    %c0_4 = arith.constant 0 : index
    %2 = vector.load %arg3[%c0_3, %c0_4] : memref<1x128xf32, #tpu.memory_space<vmem>>, vector<1x128xf32>
    %3 = vector.extract_strided_slice %0 {offsets = [0, 0], sizes = [8, 32], strides = [1, 1]} : vector<8x128xf32> to vector<8x32xf32>
    %4 = arith.truncf %3 : vector<8x32xf32> to vector<8x32xbf16>
    %cst = arith.constant dense<0.000000e+00> : vector<8x128xf32>
    %5 = tpu.matmul %4, %1, %cst {dimension_numbers = #tpu.dot_dimension_numbers<[1], [0], [0], [1], [0, 0, 1, 1], [], []>} : vector<8x32xbf16>, vector<32x128xbf16>, vector<8x128xf32> -> vector<8x128xf32>
    %6 = vector.broadcast %2 : vector<1x128xf32> to vector<8x128xf32>
    %7 = arith.addf %5, %6 : vector<8x128xf32>
    %8 = math.tanh %7 : vector<8x128xf32>
    %cst_5 = arith.constant dense<0.000000e+00> : vector<128xf32>
    %9 = vector.multi_reduction <add>, %8, %cst_5 [0] : vector<8x128xf32> to vector<128xf32>
    %10 = vector.shape_cast %9 : vector<128xf32> to vector<1x128xf32>
    %11 = vector.extract_strided_slice %0 {offsets = [0, 32], sizes = [8, 32], strides = [1, 1]} : vector<8x128xf32> to vector<8x32xf32>
    %12 = arith.truncf %11 : vector<8x32xf32> to vector<8x32xbf16>
    %cst_6 = arith.constant dense<0.000000e+00> : vector<8x128xf32>
    %13 = tpu.matmul %12, %1, %cst_6 {dimension_numbers = #tpu.dot_dimension_numbers<[1], [0], [0], [1], [0, 0, 1, 1], [], []>} : vector<8x32xbf16>, vector<32x128xbf16>, vector<8x128xf32> -> vector<8x128xf32>
    %14 = vector.broadcast %2 : vector<1x128xf32> to vector<8x128xf32>
    %15 = arith.addf %13, %14 : vector<8x128xf32>
    %16 = math.tanh %15 : vector<8x128xf32>
    %cst_7 = arith.constant dense<0.000000e+00> : vector<128xf32>
    %17 = vector.multi_reduction <add>, %16, %cst_7 [0] : vector<8x128xf32> to vector<128xf32>
    %18 = vector.shape_cast %17 : vector<128xf32> to vector<1x128xf32>
    %19 = vector.extract_strided_slice %0 {offsets = [0, 64], sizes = [8, 32], strides = [1, 1]} : vector<8x128xf32> to vector<8x32xf32>
    %20 = arith.truncf %19 : vector<8x32xf32> to vector<8x32xbf16>
    %cst_8 = arith.constant dense<0.000000e+00> : vector<8x128xf32>
    %21 = tpu.matmul %20, %1, %cst_8 {dimension_numbers = #tpu.dot_dimension_numbers<[1], [0], [0], [1], [0, 0, 1, 1], [], []>} : vector<8x32xbf16>, vector<32x128xbf16>, vector<8x128xf32> -> vector<8x128xf32>
    %22 = vector.broadcast %2 : vector<1x128xf32> to vector<8x128xf32>
    %23 = arith.addf %21, %22 : vector<8x128xf32>
    %24 = math.tanh %23 : vector<8x128xf32>
    %cst_9 = arith.constant dense<0.000000e+00> : vector<128xf32>
    %25 = vector.multi_reduction <add>, %24, %cst_9 [0] : vector<8x128xf32> to vector<128xf32>
    %26 = vector.shape_cast %25 : vector<128xf32> to vector<1x128xf32>
    %27 = vector.extract_strided_slice %0 {offsets = [0, 96], sizes = [8, 32], strides = [1, 1]} : vector<8x128xf32> to vector<8x32xf32>
    %28 = arith.truncf %27 : vector<8x32xf32> to vector<8x32xbf16>
    %cst_10 = arith.constant dense<0.000000e+00> : vector<8x128xf32>
    %29 = tpu.matmul %28, %1, %cst_10 {dimension_numbers = #tpu.dot_dimension_numbers<[1], [0], [0], [1], [0, 0, 1, 1], [], []>} : vector<8x32xbf16>, vector<32x128xbf16>, vector<8x128xf32> -> vector<8x128xf32>
    %30 = vector.broadcast %2 : vector<1x128xf32> to vector<8x128xf32>
    %31 = arith.addf %29, %30 : vector<8x128xf32>
    %32 = math.tanh %31 : vector<8x128xf32>
    %cst_11 = arith.constant dense<0.000000e+00> : vector<128xf32>
    %33 = vector.multi_reduction <add>, %32, %cst_11 [0] : vector<8x128xf32> to vector<128xf32>
    %34 = vector.shape_cast %33 : vector<128xf32> to vector<1x128xf32>
    %35 = tpu.concatenate %10, %18, %26, %34 in 0 : vector<1x128xf32>, vector<1x128xf32>, vector<1x128xf32>, vector<1x128xf32> -> vector<4x128xf32>
    %c0_12 = arith.constant 0 : index
    %c0_13 = arith.constant 0 : index
    %36 = vector.load %arg4[%c0_12, %c0_13] : memref<1x128xf32, #tpu.memory_space<vmem>>, vector<1x128xf32>
    %37 = vector.broadcast %36 : vector<1x128xf32> to vector<4x128xf32>
    %38 = arith.mulf %35, %37 : vector<4x128xf32>
    %cst_14 = arith.constant dense<0.000000e+00> : vector<4xf32>
    %39 = vector.multi_reduction <add>, %38, %cst_14 [1] : vector<4x128xf32> to vector<4xf32>
    %40 = vector.shape_cast %39 : vector<4xf32> to vector<4x1xf32>
    %cst_15 = arith.constant 1.250000e-01 : f32
    %41 = vector.broadcast %cst_15 : f32 to vector<4x1xf32>
    %42 = arith.mulf %40, %41 : vector<4x1xf32>
    %cst_16 = arith.constant dense<0xFF800000> : vector<1xf32>
    %43 = vector.multi_reduction <maximumf>, %42, %cst_16 [0] : vector<4x1xf32> to vector<1xf32>
    %44 = vector.shape_cast %43 : vector<1xf32> to vector<1x1xf32>
    %45 = vector.broadcast %44 : vector<1x1xf32> to vector<4x1xf32>
    %46 = arith.subf %42, %45 : vector<4x1xf32>
    %47 = math.exp %46 : vector<4x1xf32>
    %cst_17 = arith.constant dense<0.000000e+00> : vector<1xf32>
    %48 = vector.multi_reduction <add>, %47, %cst_17 [0] : vector<4x1xf32> to vector<1xf32>
    %49 = vector.shape_cast %48 : vector<1xf32> to vector<1x1xf32>
    %50 = vector.broadcast %49 : vector<1x1xf32> to vector<4x1xf32>
    %51 = arith.divf %47, %50 : vector<4x1xf32>
    %52 = vector.extract_strided_slice %0 {offsets = [0, 0], sizes = [8, 32], strides = [1, 1]} : vector<8x128xf32> to vector<8x32xf32>
    %53 = vector.extract_strided_slice %51 {offsets = [0, 0], sizes = [1, 1], strides = [1, 1]} : vector<4x1xf32> to vector<1x1xf32>
    %54 = vector.broadcast %53 : vector<1x1xf32> to vector<8x32xf32>
    %55 = arith.mulf %52, %54 : vector<8x32xf32>
    %56 = vector.extract_strided_slice %0 {offsets = [0, 32], sizes = [8, 32], strides = [1, 1]} : vector<8x128xf32> to vector<8x32xf32>
    %57 = vector.extract_strided_slice %51 {offsets = [1, 0], sizes = [1, 1], strides = [1, 1]} : vector<4x1xf32> to vector<1x1xf32>
    %58 = vector.broadcast %57 : vector<1x1xf32> to vector<8x32xf32>
    %59 = arith.mulf %56, %58 : vector<8x32xf32>
    %60 = arith.addf %55, %59 : vector<8x32xf32>
    %61 = vector.extract_strided_slice %0 {offsets = [0, 64], sizes = [8, 32], strides = [1, 1]} : vector<8x128xf32> to vector<8x32xf32>
    %62 = vector.extract_strided_slice %51 {offsets = [2, 0], sizes = [1, 1], strides = [1, 1]} : vector<4x1xf32> to vector<1x1xf32>
    %63 = vector.broadcast %62 : vector<1x1xf32> to vector<8x32xf32>
    %64 = arith.mulf %61, %63 : vector<8x32xf32>
    %65 = arith.addf %60, %64 : vector<8x32xf32>
    %66 = vector.extract_strided_slice %0 {offsets = [0, 96], sizes = [8, 32], strides = [1, 1]} : vector<8x128xf32> to vector<8x32xf32>
    %67 = vector.extract_strided_slice %51 {offsets = [3, 0], sizes = [1, 1], strides = [1, 1]} : vector<4x1xf32> to vector<1x1xf32>
    %68 = vector.broadcast %67 : vector<1x1xf32> to vector<8x32xf32>
    %69 = arith.mulf %66, %68 : vector<8x32xf32>
    %70 = arith.addf %65, %69 : vector<8x32xf32>
    %c0_18 = arith.constant 0 : index
    %c0_19 = arith.constant 0 : index
    %71 = vector.load %arg5[%c0_18, %c0_19] : memref<8x32xf32, #tpu.memory_space<vmem>>, vector<8x32xf32>
    tpu.vector_store %arg5[%c0_18, %c0_19], %70 {strides = array<i32>} : memref<8x32xf32, #tpu.memory_space<vmem>>, vector<8x32xf32>,
    return
  }
  func.func @transform_0(%arg0: i32) -> (i32, i32) {
    %c0_i32 = arith.constant 0 : i32
    %c0_i32_0 = arith.constant 0 : i32
    %c0_i32_1 = arith.constant 0 : i32
    return %c0_i32, %c0_i32_0 : i32, i32
  }
  func.func @transform_1(%arg0: i32) -> (i32, i32) {
    %c0_i32 = arith.constant 0 : i32
    %c0_i32_0 = arith.constant 0 : i32
    %c0_i32_1 = arith.constant 0 : i32
    return %c0_i32, %c0_i32_0 : i32, i32
  }
  func.func @transform_2(%arg0: i32) -> (i32, i32) {
    %c0_i32 = arith.constant 0 : i32
    %c0_i32_0 = arith.constant 0 : i32
    %c0_i32_1 = arith.constant 0 : i32
    return %c0_i32, %c0_i32_0 : i32, i32
  }
  func.func @transform_3(%arg0: i32) -> (i32, i32) {
    %c0_i32 = arith.constant 0 : i32
    %c0_i32_0 = arith.constant 0 : i32
    %c0_i32_1 = arith.constant 0 : i32
    return %c0_i32, %c0_i32_0 : i32, i32
  }
  func.func @transform_4(%arg0: i32) -> (i32, i32) {
    %c0_i32 = arith.constant 0 : i32
    %c0_i32_0 = arith.constant 0 : i32
    %c0_i32_1 = arith.constant 0 : i32
    return %c0_i32, %c0_i32_0 : i32, i32
  }
}

</mosaic_0001>

<llo_original>
// kernel: hybrid_attention.1
$region0: #{hybrid_attention.1}
  #allocation0 [shape = 'u32[]', space=smem, size = 0x4, offset = 0x4, fixed_abs, tag = 'smem constant byte address 0x4 - core index']
  #allocation1 [shape = 'u32[144,128]{1,0:T(1,128)}', space=vmem, size = 0x12000, scoped, tag = 'internal scratch']
  %s0 = inlined_call_operand.vmem [shape: f32[8,128], index: 0, kind: input, shape index: {}]
  %s1 = inlined_call_operand.vmem [shape: bf16[32,128], index: 1, kind: input, shape index: {}]
  %s2 = inlined_call_operand.vmem [shape: f32[1,128], index: 2, kind: input, shape index: {}]
  %s3 = inlined_call_operand.vmem [shape: f32[1,128], index: 3, kind: input, shape index: {}]
  %s4 = inlined_call_operand.hbm [shape: f32[8,32], index: 4, kind: output, shape index: {}]
  %s5 = sld [smem:[#allocation0]]
  $region26: #{hybrid_attention.1} parent=0
    _
  %s7 = ssub.s32 1, %s5
  %s8 = scalar_select 0, %s7, %s5
  $region1: #{hybrid_attention.1} parent=0
    #allocation2 [shape = 'u8[4096]{0}', space=vmem, size = 0x1000, scoped, tag = 'output window, operand 0, single buffered']
    #allocation3 [shape = 's32[1]{0}', space=sflag, size = 0x4, scoped, tag = 'scoped memory for hybrid_attention.1']
    %9 = vsyncpa [#allocation3], 0
    // Predicated region
    $region2: #{hybrid_attention.1} parent=1 // pred_check
      _
    $region3: #{hybrid_attention.1} parent=1 // pred_check_branch
      %11 = sbr.rel (0) target = $region5
    $region4: #{hybrid_attention.1} parent=1 // pred_region
      _
    $region5: #{hybrid_attention.1} parent=1 // pred_fallthru
      _
    // Predicated region
    $region6: #{hybrid_attention.1} parent=1 // pred_check
      _
    $region7: #{hybrid_attention.1} parent=1 // pred_check_branch
      %13 = sbr.rel (0) target = $region9
    $region8: #{hybrid_attention.1} parent=1 // pred_region
      _
    $region9: #{hybrid_attention.1} parent=1 // pred_fallthru
      _
    // Predicated region
    $region10: #{hybrid_attention.1} parent=1 // pred_check
      _
    $region11: #{hybrid_attention.1} parent=1 // pred_check_branch
      %15 = sbr.rel (0) target = $region13
    $region12: #{hybrid_attention.1} parent=1 // pred_region
      _
    $region13: #{hybrid_attention.1} parent=1 // pred_fallthru
      _
    // Predicated region
    $region14: #{hybrid_attention.1} parent=1 // pred_check
      _
    $region15: #{hybrid_attention.1} parent=1 // pred_check_branch
      %17 = sbr.rel (0) target = $region17
    $region16: #{hybrid_attention.1} parent=1 // pred_region
      _
    $region17: #{hybrid_attention.1} parent=1 // pred_fallthru
      _
    %v19 = vld [vmem:[%s0] sm:$0xff]
    %v20 = vld [vmem:[%s1] sm:$0xf]
    %v21 = vld [vmem:[%s1 + $0x4] sm:$0xf]
    %v22 = vld [vmem:[%s1 + $0x8] sm:$0xf]
    %v23 = vld [vmem:[%s1 + $0xc] sm:$0xf]
    %v24 = vld [vmem:[%s2] sm:$0x1]
    %v25 = vpack.c.bf16 %v19, %v19
    %v27 = vlaneseq
    %v28 = vshrl.u32 %v27, 7
    %v29 = vsub.s32 0, %v28
    %v30 = vrot.slane %v24, %v29
    %v36 = vunpack.c.l.b16 %v20
    %v37 = vunpack.c.l.b16 %v21
    %v38 = vunpack.c.l.b16 %v22
    %v39 = vunpack.c.l.b16 %v23
    %v40 = vpack.c.b16 %v37, %v36
    %v41 = vpack.c.b16 %v39, %v38
    %vm44 = vcmask 261120
    %v46 = vsel %vm44, %v25, 0
    %48 = vmatprep.subr.bf16.mxu0 0
    %49 = vmatpush1.bf16.msra.mxu0 %v40
    %50 = vmatprep.subr.bf16.mxu0 0
    %51 = vmatpush1.bf16.msra.mxu0 %v41
    %52 = vmatprep.subr.bf16.mxu0 0
    %53 = vmatpush1.bf16.msra.mxu0 0
    %54 = vmatprep.subr.bf16.mxu0 0
    %55 = vmatpush1.bf16.msra.mxu0 0
    %56 = vmatprep.subr.bf16.mxu0 0
    %57 = vmatpush1.bf16.msra.mxu0 0
    %58 = vmatprep.subr.bf16.mxu0 0
    %59 = vmatpush1.bf16.msra.mxu0 0
    %60 = vmatprep.subr.bf16.mxu0 0
    %61 = vmatpush1.bf16.msra.mxu0 0
    %62 = vmatprep.subr.bf16.mxu0 0
    %63 = vmatpush1.bf16.msra.mxu0 0
    %64 = vmatprep.subr.bf16.mxu0 0
    %65 = vmatpush1.bf16.msra.mxu0 0
    %66 = vmatprep.subr.bf16.mxu0 0
    %67 = vmatpush1.bf16.msra.mxu0 0
    %68 = vmatprep.subr.bf16.mxu0 0
    %69 = vmatpush1.bf16.msra.mxu0 0
    %70 = vmatprep.subr.bf16.mxu0 0
    %71 = vmatpush1.bf16.msra.mxu0 0
    %72 = vmatprep.subr.bf16.mxu0 0
    %73 = vmatpush1.bf16.msra.mxu0 0
    %74 = vmatprep.subr.bf16.mxu0 0
    %75 = vmatpush1.bf16.msra.mxu0 0
    %76 = vmatprep.subr.bf16.mxu0 0
    %77 = vmatpush1.bf16.msra.mxu0 0
    %78 = vmatprep.subr.bf16.mxu0 0
    %79 = vmatpush1.bf16.msra.mxu0 0
    %80 = vmatprep.mubr.bf16.mxu0 0
    %81 = vmatmul.mubr.bf16.gmra.mrb[0].mxu0 %v46
    %v82 = vpop.f32.mrb[0].mxu0
    %v83 = vadd.f32 %v30, %v82
    %v84 = vpop.f32.mrb[0].mxu0
    %v85 = vpop.f32.mrb[0].mxu0
    %v86 = vpop.f32.mrb[0].mxu0
    %87 = vdwg.mxu0
    %v88 = vtanh.pop %v83
    %v89 = vrot.slane %v88, 4
    %v90 = vadd.f32 %v88, %v89
    %v91 = vrot.slane %v90, 2
    %v92 = vadd.f32 %v90, %v91
    %v93 = vrot.slane %v92, 1
    %v94 = vadd.f32 %v92, %v93
    %96 = vrot.lane.b32.xlu0 %v25, 96
    %v97 = vpop.permute.xlu0 %96
    %v99 = vsel %vm44, %v97, 0
    %101 = vmatprep.subr.bf16.mxu0 0
    %102 = vmatpush1.bf16.msra.mxu0 %v40
    %103 = vmatprep.subr.bf16.mxu0 0
    %104 = vmatpush1.bf16.msra.mxu0 %v41
    %105 = vmatprep.subr.bf16.mxu0 0
    %106 = vmatpush1.bf16.msra.mxu0 0
    %107 = vmatprep.subr.bf16.mxu0 0
    %108 = vmatpush1.bf16.msra.mxu0 0
    %109 = vmatprep.subr.bf16.mxu0 0
    %110 = vmatpush1.bf16.msra.mxu0 0
    %111 = vmatprep.subr.bf16.mxu0 0
    %112 = vmatpush1.bf16.msra.mxu0 0
    %113 = vmatprep.subr.bf16.mxu0 0
    %114 = vmatpush1.bf16.msra.mxu0 0
    %115 = vmatprep.subr.bf16.mxu0 0
    %116 = vmatpush1.bf16.msra.mxu0 0
    %117 = vmatprep.subr.bf16.mxu0 0
    %118 = vmatpush1.bf16.msra.mxu0 0
    %119 = vmatprep.subr.bf16.mxu0 0
    %120 = vmatpush1.bf16.msra.mxu0 0
    %121 = vmatprep.subr.bf16.mxu0 0
    %122 = vmatpush1.bf16.msra.mxu0 0
    %123 = vmatprep.subr.bf16.mxu0 0
    %124 = vmatpush1.bf16.msra.mxu0 0
    %125 = vmatprep.subr.bf16.mxu0 0
    %126 = vmatpush1.bf16.msra.mxu0 0
    %127 = vmatprep.subr.bf16.mxu0 0
    %128 = vmatpush1.bf16.msra.mxu0 0
    %129 = vmatprep.subr.bf16.mxu0 0
    %130 = vmatpush1.bf16.msra.mxu0 0
    %131 = vmatprep.subr.bf16.mxu0 0
    %132 = vmatpush1.bf16.msra.mxu0 0
    %133 = vmatprep.mubr.bf16.mxu0 0
    %134 = vmatmul.mubr.bf16.gmra.mrb[0].mxu0 %v99
    %v135 = vpop.f32.mrb[0].mxu0
    %v136 = vadd.f32 %v30, %v135
    %v137 = vpop.f32.mrb[0].mxu0
    %v138 = vpop.f32.mrb[0].mxu0
    %v139 = vpop.f32.mrb[0].mxu0
    %140 = vdwg.mxu0
    %v141 = vtanh.pop %v136
    %v142 = vrot.slane %v141, 4
    %v143 = vadd.f32 %v141, %v142
    %v144 = vrot.slane %v143, 2
    %v145 = vadd.f32 %v143, %v144
    %v146 = vrot.slane %v145, 1
    %v147 = vadd.f32 %v145, %v146
    %148 = vrot.lane.b32.xlu0 %v25, 64
    %v149 = vpop.permute.xlu0 %148
    %v151 = vsel %vm44, %v149, 0
    %153 = vmatprep.subr.bf16.mxu0 0
    %154 = vmatpush1.bf16.msra.mxu0 %v40
    %155 = vmatprep.subr.bf16.mxu0 0
    %156 = vmatpush1.bf16.msra.mxu0 %v41
    %157 = vmatprep.subr.bf16.mxu0 0
    %158 = vmatpush1.bf16.msra.mxu0 0
    %159 = vmatprep.subr.bf16.mxu0 0
    %160 = vmatpush1.bf16.msra.mxu0 0
    %161 = vmatprep.subr.bf16.mxu0 0
    %162 = vmatpush1.bf16.msra.mxu0 0
    %163 = vmatprep.subr.bf16.mxu0 0
    %164 = vmatpush1.bf16.msra.mxu0 0
    %165 = vmatprep.subr.bf16.mxu0 0
    %166 = vmatpush1.bf16.msra.mxu0 0
    %167 = vmatprep.subr.bf16.mxu0 0
    %168 = vmatpush1.bf16.msra.mxu0 0
    %169 = vmatprep.subr.bf16.mxu0 0
    %170 = vmatpush1.bf16.msra.mxu0 0
    %171 = vmatprep.subr.bf16.mxu0 0
    %172 = vmatpush1.bf16.msra.mxu0 0
    %173 = vmatprep.subr.bf16.mxu0 0
    %174 = vmatpush1.bf16.msra.mxu0 0
    %175 = vmatprep.subr.bf16.mxu0 0
    %176 = vmatpush1.bf16.msra.mxu0 0
    %177 = vmatprep.subr.bf16.mxu0 0
    %178 = vmatpush1.bf16.msra.mxu0 0
    %179 = vmatprep.subr.bf16.mxu0 0
    %180 = vmatpush1.bf16.msra.mxu0 0
    %181 = vmatprep.subr.bf16.mxu0 0
    %182 = vmatpush1.bf16.msra.mxu0 0
    %183 = vmatprep.subr.bf16.mxu0 0
    %184 = vmatpush1.bf16.msra.mxu0 0
    %185 = vmatprep.mubr.bf16.mxu0 0
    %186 = vmatmul.mubr.bf16.gmra.mrb[0].mxu0 %v151
    %v187 = vpop.f32.mrb[0].mxu0
    %v188 = vadd.f32 %v30, %v187
    %v189 = vpop.f32.mrb[0].mxu0
    %v190 = vpop.f32.mrb[0].mxu0
    %v191 = vpop.f32.mrb[0].mxu0
    %192 = vdwg.mxu0
    %v193 = vtanh.pop %v188
    %v194 = vrot.slane %v193, 4
    %v195 = vadd.f32 %v193, %v194
    %v196 = vrot.slane %v195, 2
    %v197 = vadd.f32 %v195, %v196
    %v198 = vrot.slane %v197, 1
    %v199 = vadd.f32 %v197, %v198
    %200 = vrot.lane.b32.xlu0 %v25, 32
    %v201 = vpop.permute.xlu0 %200
    %v203 = vsel %vm44, %v201, 0
    %205 = vmatprep.subr.bf16.mxu0 0
    %206 = vmatpush1.bf16.msra.mxu0 %v40
    %207 = vmatprep.subr.bf16.mxu0 0
    %208 = vmatpush1.bf16.msra.mxu0 %v41
    %209 = vmatprep.subr.bf16.mxu0 0
    %210 = vmatpush1.bf16.msra.mxu0 0
    %211 = vmatprep.subr.bf16.mxu0 0
    %212 = vmatpush1.bf16.msra.mxu0 0
    %213 = vmatprep.subr.bf16.mxu0 0
    %214 = vmatpush1.bf16.msra.mxu0 0
    %215 = vmatprep.subr.bf16.mxu0 0
    %216 = vmatpush1.bf16.msra.mxu0 0
    %217 = vmatprep.subr.bf16.mxu0 0
    %218 = vmatpush1.bf16.msra.mxu0 0
    %219 = vmatprep.subr.bf16.mxu0 0
    %220 = vmatpush1.bf16.msra.mxu0 0
    %221 = vmatprep.subr.bf16.mxu0 0
    %222 = vmatpush1.bf16.msra.mxu0 0
    %223 = vmatprep.subr.bf16.mxu0 0
    %224 = vmatpush1.bf16.msra.mxu0 0
    %225 = vmatprep.subr.bf16.mxu0 0
    %226 = vmatpush1.bf16.msra.mxu0 0
    %227 = vmatprep.subr.bf16.mxu0 0
    %228 = vmatpush1.bf16.msra.mxu0 0
    %229 = vmatprep.subr.bf16.mxu0 0
    %230 = vmatpush1.bf16.msra.mxu0 0
    %231 = vmatprep.subr.bf16.mxu0 0
    %232 = vmatpush1.bf16.msra.mxu0 0
    %233 = vmatprep.subr.bf16.mxu0 0
    %234 = vmatpush1.bf16.msra.mxu0 0
    %235 = vmatprep.subr.bf16.mxu0 0
    %236 = vmatpush1.bf16.msra.mxu0 0
    %237 = vmatprep.mubr.bf16.mxu0 0
    %238 = vmatmul.mubr.bf16.gmra.mrb[0].mxu0 %v203
    %v239 = vpop.f32.mrb[0].mxu0
    %v240 = vadd.f32 %v30, %v239
    %v241 = vpop.f32.mrb[0].mxu0
    %v242 = vpop.f32.mrb[0].mxu0
    %v243 = vpop.f32.mrb[0].mxu0
    %244 = vdwg.mxu0
    %v245 = vtanh.pop %v240
    %v246 = vrot.slane %v245, 4
    %v247 = vadd.f32 %v245, %v246
    %v248 = vrot.slane %v247, 2
    %v249 = vadd.f32 %v247, %v248
    %v250 = vrot.slane %v249, 1
    %v251 = vadd.f32 %v249, %v250
    %vm252 = vcmask 1040384
    %v253 = vsel %vm252, %v94, %v147
    %vm254 = vcmask 1041408
    %v255 = vsel %vm254, %v253, %v199
    %vm256 = vcmask 1042432
    %v257 = vsel %vm256, %v255, %v251
    %v258 = vld [vmem:[%s3] sm:$0x1]
    %v260 = vlaneseq
    %v261 = vshrl.u32 %v260, 7
    %v262 = vsub.s32 0, %v261
    %v263 = vrot.slane %v258, %v262
    %v265 = vmul.f32 %v257, %v263
    %vm266 = vcmask 1043456
    %v267 = vsel %vm266, %v265, 0.0
    %268 = vadd.xlane.f32.xlu0 %v267
    %v269 = vpop.xlane.xlu0 %268
    %v270 = vmul.f32 %v269, 0.125
    %v271 = vsel %vm266, %v270, -inf
    %v272 = vrot.slane %v271, 4
    %v273 = vmax.f32 %v271, %v272
    %v274 = vrot.slane %v273, 2
    %v275 = vmax.f32 %v273, %v274
    %v276 = vrot.slane %v275, 1
    %v277 = vmax.f32 %v275, %v276
    %v278 = vsub.f32 %v270, %v277
    %v279 = vmul.f32 %v278, 1.442695
    %v280 = vpow.pop %v279
    %v281 = vsel %vm266, %v280, 0.0
    %v282 = vrot.slane %v281, 4
    %v283 = vadd.f32 %v281, %v282
    %v284 = vrot.slane %v283, 2
    %v285 = vadd.f32 %v283, %v284
    %v286 = vrot.slane %v285, 1
    %v287 = vadd.f32 %v285, %v286
    %v288 = vrcp.pop %v287
    %v289 = vmul.f32 %v280, %v288
    %v290 = vlaneseq
    %v291 = vshrl.u32 %v290, 7
    %v292 = vsub.s32 0, %v291
    %v293 = vrot.slane %v289, %v292
    %v294 = vmul.f32 %v19, %v293
    %v295 = vlaneseq
    %v296 = vshrl.u32 %v295, 7
    %v297 = vsub.s32 1, %v296
    %v298 = vrot.slane %v289, %v297
    %v299 = vmul.f32 %v19, %v298
    %301 = vrot.lane.b32.xlu0 %v299, 96
    %v302 = vpop.permute.xlu0 %301
    %v304 = vadd.f32 %v294, %v302
    %v305 = vlaneseq
    %v306 = vshrl.u32 %v305, 7
    %v307 = vsub.s32 2, %v306
    %v308 = vrot.slane %v289, %v307
    %v309 = vmul.f32 %v19, %v308
    %311 = vrot.lane.b32.xlu0 %v309, 64
    %v312 = vpop.permute.xlu0 %311
    %v314 = vadd.f32 %v304, %v312
    %v315 = vlaneseq
    %v316 = vshrl.u32 %v315, 7
    %v317 = vsub.s32 3, %v316
    %v318 = vrot.slane %v289, %v317
    %v319 = vmul.f32 %v19, %v318
    %321 = vrot.lane.b32.xlu0 %v319, 32
    %v322 = vpop.permute.xlu0 %321
    %v324 = vadd.f32 %v314, %v322
    %325 = vst.msk [vmem:[#allocation2] sm:$0xff] %vm44, %v324
    // Predicated region
    $region18: #{hybrid_attention.1} parent=1 // pred_check
      _
    $region19: #{hybrid_attention.1} parent=1 // pred_check_branch
      %327 = sbr.rel (0) target = $region21
    $region20: #{hybrid_attention.1} parent=1 // pred_region
      %s329 = ssub.s32 128, 128
      %330 = vsyncadd [#allocation3], %s329
      %s332 = sshll.u32 [#allocation2], 4
      %s333 = int_to_ptr.vmem [resolvable:$true] %s332
      %335 = dma.vmem_to_hbm [thread:$0]  %s333, 128, %s4, [#allocation3]
    $region21: #{hybrid_attention.1} parent=1 // pred_fallthru
      _
    // Predicated region
    $region22: #{hybrid_attention.1} parent=1 // pred_check
      _
    $region23: #{hybrid_attention.1} parent=1 // pred_check_branch
      %337 = sbr.rel (0) target = $region25
    $region24: #{hybrid_attention.1} parent=1 // pred_region
      %338 = dma.done [#allocation3], 128
    $region25: #{hybrid_attention.1} parent=1 // pred_fallthru
      _
    %339 = vsyncpa [#allocation3], 1

</llo_original>
